<compile_context>
chip_gen: v7x
topology: tpu7x:2x2x1
jax: 0.10.0
libtpu: 0.0.40
codegen_flags: <defaults>
</compile_context>

<pallas_src>
import functools

import jax
import jax.numpy as jnp
import numpy as np
from jax import lax
from jax.experimental import pallas as pl
from jax.experimental.pallas import tpu as pltpu


def _local_attention_kernel(
    xv_ref,    # (1, C,  tn)  video tokens, channels-first, bf16
    xt_ref,    # (1, Ct, L)   text tokens,  channels-first, bf16
    bias_ref,  # (1, L,  HW)  additive mask bias (0 keep / -1e9 drop), f32
    wq_ref,    # (D, C)       bf16, attention scale pre-folded
    bq_ref,    # (D, 1)       f32,  attention scale pre-folded
    wkv_ref,   # (2D, Ct)     bf16  (K rows then V rows)
    bkv_ref,   # (2D, 1)      f32
    out_ref,   # (1, D, tn)
    *,
    attention_dim,
    frames_per_tile,
):
    xv = xv_ref[0]        # (C, tn)  bf16
    xt = xt_ref[0]        # (Ct, L)  bf16
    bias = bias_ref[0]    # (L, HW)  f32

    # Channels-first projections (tokens in lanes); scale already folded into wq/bq.
    q_cf = jnp.dot(wq_ref[...], xv, preferred_element_type=jnp.float32) + bq_ref[...]   # (D, tn)
    kv = jnp.dot(wkv_ref[...], xt, preferred_element_type=jnp.float32) + bkv_ref[...]   # (2D, L)
    k_cf = kv[:attention_dim]                                                           # (D, L)
    v_cf = kv[attention_dim:]                                                           # (D, L)

    # Lane-dense scores: scores[l, t] = sum_d k[d, l] * q[d, t]  -> (L, tn).
    scores = lax.dot_general(
        k_cf, q_cf, (((0,), (0,)), ((), ())), preferred_element_type=jnp.float32
    )

    # Additive mask bias; the spatial mask is identical for every frame in the tile.
    if frames_per_tile > 1:
        bias = jnp.concatenate([bias] * frames_per_tile, axis=1)                        # (L, tn)
    scores = scores + bias

    # Softmax over the text tokens (sublane axis), f32 math.
    m = jnp.max(scores, axis=0, keepdims=True)            # (1, tn)
    p = jnp.exp(scores - m)                                # (L, tn)
    denom = jnp.sum(p, axis=0, keepdims=True)              # (1, tn)
    att = p * pl.reciprocal(denom, approx=True)            # (L, tn)

    # out[d, t] = sum_l v[d, l] * att[l, t]   — plain (D, L) x (L, tn) MXU matmul.
    out_cf = jnp.dot(v_cf, att, preferred_element_type=jnp.float32)                     # (D, tn)
    out_ref[0] = out_cf.astype(out_ref.dtype)


def _choose_frames_per_tile(T, HW, B, tile_tokens):
    """Largest k | T with tn = k*HW <= tile_tokens and a layout-legal token axis
    (tn % 128 == 0 or tn == T*HW).  Prefer >= 2 grid steps when B == 1 (v7x)."""
    valid = [k for k in range(1, T + 1)
             if T % k == 0 and ((k * HW) % 128 == 0 or k == T)]
    fitting = [k for k in valid if k * HW <= tile_tokens] or [min(valid)]
    k = max(fitting)
    if B == 1:
        two_step = [kk for kk in fitting if T // kk >= 2]
        if two_step:
            k = max(two_step)
    return k


def local_attention_forward(fea_video, fea_text, mask, params, *, tile_tokens=2048):
    """fea_video: (B, C, T, H, W), fea_text: (B, Ct, L), mask: (B, H*W, L) of {0,1}.

    Returns (B, D, T, H, W) with D = attention_dim (== C in the PyTorch module)."""
    wq, bq, wk, bk, wv, bv = params
    D, C = wq.shape
    Ct = wk.shape[1]
    B, Cv, T, H, W = fea_video.shape
    assert Cv == C, "video feature dim must match the Q projection input dim"
    L = fea_text.shape[2]
    HW = H * W
    THW = T * HW
    scale = float(D) ** -0.5

    # ---- wrapper prep (pure reshapes + tiny tensors; no T-broadcast, no pad) ----
    xv = fea_video.reshape(B, C, THW).astype(jnp.bfloat16)         # channels-first stream
    xt = fea_text.astype(jnp.bfloat16)
    # Additive mask bias for ONE frame, transposed to (B, L, HW) to match (L, tn) scores.
    bias = jnp.transpose((mask.astype(jnp.float32) - 1.0) * 1e9, (0, 2, 1))
    # Fold the attention scale into the Q projection; fuse the K/V projections.
    wq_s = (wq * scale).astype(jnp.bfloat16)
    bq_s = (bq * scale).reshape(D, 1).astype(jnp.float32)
    wkv = jnp.concatenate([wk, wv], axis=0).astype(jnp.bfloat16)   # (2D, Ct)
    bkv = jnp.concatenate([bk, bv], axis=0).reshape(2 * D, 1).astype(jnp.float32)

    # ---- tiling: whole frames per tile so the mask block never changes ----
    # TODO(synk): sub-frame tiling (tn dividing HW) for very large single frames.
    k_frames = _choose_frames_per_tile(T, HW, B, tile_tokens)
    tn = k_frames * HW
    nt = T // k_frames

    # VMEM budget (double-buffered BlockSpec tiles + main f32 intermediates).
    vmem_bytes = (
        2 * C * tn * 2            # xv (bf16, double-buffered)
        + 2 * D * tn * 4          # out (f32, double-buffered)
        + 2 * (Ct * L * 2 + L * HW * 4)
        + (D * C + 2 * D * Ct) * 2 + 3 * D * 4
        + 2 * D * tn * 4          # q_cf / out_cf
        + 4 * L * tn * 4          # scores / p / att / bias tile
    )
    vmem_limit = int(min(max(2 * vmem_bytes, 16 << 20), 48 << 20))

    flops = 2 * B * (D * C * THW + nt * 2 * D * Ct * L + 2 * D * L * THW)
    transcendentals = B * THW * (L + 1)
    bytes_accessed = (
        B * C * THW * 2 + B * Ct * L * 2 + B * L * HW * 4 + B * D * THW * 4
        + (D * C + 2 * D * Ct) * 2 + 3 * D * 4
    )

    out = pl.pallas_call(
        functools.partial(
            _local_attention_kernel,
            attention_dim=D,
            frames_per_tile=k_frames,
        ),
        out_shape=jax.ShapeDtypeStruct((B, D, THW), fea_video.dtype),
        grid_spec=pltpu.PrefetchScalarGridSpec(
            num_scalar_prefetch=0,
            grid=(B, nt),
            in_specs=[
                pl.BlockSpec((1, C, tn), lambda b, n: (b, 0, n)),
                pl.BlockSpec((1, Ct, L), lambda b, n: (b, 0, 0)),
                pl.BlockSpec((1, L, HW), lambda b, n: (b, 0, 0)),
                pl.BlockSpec((D, C), lambda b, n: (0, 0)),
                pl.BlockSpec((D, 1), lambda b, n: (0, 0)),
                pl.BlockSpec((2 * D, Ct), lambda b, n: (0, 0)),
                pl.BlockSpec((2 * D, 1), lambda b, n: (0, 0)),
            ],
            out_specs=pl.BlockSpec((1, D, tn), lambda b, n: (b, 0, n)),
        ),
        compiler_params=pltpu.CompilerParams(
            dimension_semantics=("parallel", "parallel"),
            vmem_limit_bytes=vmem_limit,
        ),
        cost_estimate=pl.CostEstimate(
            flops=flops,
            transcendentals=transcendentals,
            bytes_accessed=bytes_accessed,
        ),
    )(xv, xt, bias, wq_s, bq_s, wkv, bkv)

    # Output is already channels-first: pure reshape back to (B, D, T, H, W).
    return out.reshape(B, D, T, H, W)


def local_attention_reference(fea_video, fea_text, mask, params):
    """Pure-JAX f32 reference mirroring the PyTorch forward (per-frame loop)."""
    wq, bq, wk, bk, wv, bv = params
    D = wq.shape[0]
    B, C, T, H, W = fea_video.shape
    scale = float(D) ** -0.5
    hp = lax.Precision.HIGHEST

    ft = jnp.transpose(fea_text, (0, 2, 1))                                  # (B, L, Ct)
    k = jnp.einsum("blc,dc->bld", ft, wk, precision=hp) + bk[None, None, :]  # (B, L, D)
    v = jnp.einsum("blc,dc->bld", ft, wv, precision=hp) + bv[None, None, :]  # (B, L, D)

    outs = []
    for t in range(T):
        frame = fea_video[:, :, t, :, :].reshape(B, C, H * W)
        frame = jnp.transpose(frame, (0, 2, 1))                              # (B, HW, C)
        q = jnp.einsum("bnc,dc->bnd", frame, wq, precision=hp) + bq[None, None, :]
        att = jnp.einsum("bnd,bld->bnl", q, k, precision=hp) * scale
        att = jnp.where(mask == 0, -1e9, att)
        att = jax.nn.softmax(att, axis=-1)
        o = jnp.einsum("bnl,bld->bnd", att, v, precision=hp)                 # (B, HW, D)
        o = jnp.transpose(o, (0, 2, 1)).reshape(B, D, H, W)[:, :, None, :, :]
        outs.append(o)
    return jnp.concatenate(outs, axis=2)


def make_params(key, video_feature_dim, text_dim, attention_dim):
    kq, kbq, kk, kbk, kv, kbv = jax.random.split(key, 6)
    wq = jax.random.normal(kq, (attention_dim, video_feature_dim), jnp.float32) * 0.1
    bq = jax.random.normal(kbq, (attention_dim,), jnp.float32) * 0.1
    wk = jax.random.normal(kk, (attention_dim, text_dim), jnp.float32) * 0.1
    bk = jax.random.normal(kbk, (attention_dim,), jnp.float32) * 0.1
    wv = jax.random.normal(kv, (attention_dim, text_dim), jnp.float32) * 0.1
    bv = jax.random.normal(kbv, (attention_dim,), jnp.float32) * 0.1
    return wq, bq, wk, bk, wv, bv


if __name__ == "__main__":
    # attention_dim == video_feature_dim (the PyTorch .view(B, C, H, W) requires it)
    B, C, Ct, D, T, H, W, L = 2, 32, 16, 32, 2, 8, 8, 8

    key = jax.random.PRNGKey(0)
    k1, k2, k3, k4 = jax.random.split(key, 4)
    fea_video = jax.random.normal(k1, (B, C, T, H, W), jnp.float32)
    fea_text = jax.random.normal(k2, (B, Ct, L), jnp.float32)
    mask = (jax.random.uniform(k3, (B, H * W, L)) > 0.3).astype(jnp.float32)
    mask = mask.at[:, :, 0].set(1.0)  # keep at least one valid text token per query
    params = make_params(k4, C, Ct, D)

    out = jax.block_until_ready(
        local_attention_forward(fea_video, fea_text, mask, params)
    )
    ref = jax.block_until_ready(
        local_attention_reference(fea_video, fea_text, mask, params)
    )

    assert out.shape == (B, D, T, H, W)
    # bf16 MXU inputs (f32 accumulation / softmax): ~1e-2-level relative tolerance.
    np.testing.assert_allclose(np.asarray(out), np.asarray(ref), rtol=2e-2, atol=2e-2)

    print("KERNEL_OK")
</pallas_src>

<mosaic_0001>
module attributes {stable_mosaic.version = 11 : i64} {
  func.func @_local_attention_kernel(%arg0: i32, %arg1: i32, %arg2: memref<1x32x128xbf16, #tpu.memory_space<vmem>>, %arg3: memref<1x16x8xbf16, #tpu.memory_space<vmem>>, %arg4: memref<1x8x64xf32, #tpu.memory_space<vmem>>, %arg5: memref<32x32xbf16, #tpu.memory_space<vmem>>, %arg6: memref<32x1xf32, #tpu.memory_space<vmem>>, %arg7: memref<64x16xbf16, #tpu.memory_space<vmem>>, %arg8: memref<64x1xf32, #tpu.memory_space<vmem>>, %arg9: memref<1x32x128xf32, #tpu.memory_space<vmem>>) attributes {dimension_semantics = [#tpu.dimension_semantics<parallel>, #tpu.dimension_semantics<parallel>], iteration_bounds = array<i64: 2, 1>, scalar_prefetch = 0 : i64, scratch_operands = 0 : i64, tpu.core_type = #tpu.core_type<tc>, window_params = [{transform_indices = @transform_0, window_bounds = array<i64: 1, 32, 128>}, {transform_indices = @transform_1, window_bounds = array<i64: 1, 16, 8>}, {transform_indices = @transform_2, window_bounds = array<i64: 1, 8, 64>}, {pipeline_mode = #tpu.pipeline_mode<synchronous>, transform_indices = @transform_3, window_bounds = array<i64: 32, 32>}, {pipeline_mode = #tpu.pipeline_mode<synchronous>, transform_indices = @transform_4, window_bounds = array<i64: 32, 1>}, {pipeline_mode = #tpu.pipeline_mode<synchronous>, transform_indices = @transform_5, window_bounds = array<i64: 64, 16>}, {pipeline_mode = #tpu.pipeline_mode<synchronous>, transform_indices = @transform_6, window_bounds = array<i64: 64, 1>}, {transform_indices = @transform_7, window_bounds = array<i64: 1, 32, 128>}]} {
    %c0 = arith.constant 0 : index
    %c0_0 = arith.constant 0 : index
    %c0_1 = arith.constant 0 : index
    %0 = vector.load %arg2[%c0, %c0_0, %c0_1] : memref<1x32x128xbf16, #tpu.memory_space<vmem>>, vector<1x32x128xbf16>
    %1 = vector.shape_cast %0 : vector<1x32x128xbf16> to vector<32x128xbf16>
    %c0_2 = arith.constant 0 : index
    %c0_3 = arith.constant 0 : index
    %c0_4 = arith.constant 0 : index
    %2 = vector.load %arg3[%c0_2, %c0_3, %c0_4] : memref<1x16x8xbf16, #tpu.memory_space<vmem>>, vector<1x16x8xbf16>
    %3 = vector.shape_cast %2 : vector<1x16x8xbf16> to vector<16x8xbf16>
    %c0_5 = arith.constant 0 : index
    %c0_6 = arith.constant 0 : index
    %c0_7 = arith.constant 0 : index
    %4 = vector.load %arg4[%c0_5, %c0_6, %c0_7] : memref<1x8x64xf32, #tpu.memory_space<vmem>>, vector<1x8x64xf32>
    %5 = vector.shape_cast %4 : vector<1x8x64xf32> to vector<8x64xf32>
    %c0_8 = arith.constant 0 : index
    %c0_9 = arith.constant 0 : index
    %6 = vector.load %arg5[%c0_8, %c0_9] : memref<32x32xbf16, #tpu.memory_space<vmem>>, vector<32x32xbf16>
    %cst = arith.constant dense<0.000000e+00> : vector<32x128xf32>
    %7 = tpu.matmul %6, %1, %cst {dimension_numbers = #tpu.dot_dimension_numbers<[1], [0], [0], [1], [0, 0, 1, 1], [], []>} : vector<32x32xbf16>, vector<32x128xbf16>, vector<32x128xf32> -> vector<32x128xf32>
    %c0_10 = arith.constant 0 : index
    %c0_11 = arith.constant 0 : index
    %8 = vector.load %arg6[%c0_10, %c0_11] : memref<32x1xf32, #tpu.memory_space<vmem>>, vector<32x1xf32>
    %9 = vector.broadcast %8 : vector<32x1xf32> to vector<32x128xf32>
    %10 = arith.addf %7, %9 : vector<32x128xf32>
    %c0_12 = arith.constant 0 : index
    %c0_13 = arith.constant 0 : index
    %11 = vector.load %arg7[%c0_12, %c0_13] : memref<64x16xbf16, #tpu.memory_space<vmem>>, vector<64x16xbf16>
    %cst_14 = arith.constant dense<0.000000e+00> : vector<64x8xf32>
    %12 = tpu.matmul %11, %3, %cst_14 {dimension_numbers = #tpu.dot_dimension_numbers<[1], [0], [0], [1], [0, 0, 1, 1], [], []>} : vector<64x16xbf16>, vector<16x8xbf16>, vector<64x8xf32> -> vector<64x8xf32>
    %c0_15 = arith.constant 0 : index
    %c0_16 = arith.constant 0 : index
    %13 = vector.load %arg8[%c0_15, %c0_16] : memref<64x1xf32, #tpu.memory_space<vmem>>, vector<64x1xf32>
    %14 = vector.broadcast %13 : vector<64x1xf32> to vector<64x8xf32>
    %15 = arith.addf %12, %14 : vector<64x8xf32>
    %16 = vector.extract_strided_slice %15 {offsets = [0, 0], sizes = [32, 8], strides = [1, 1]} : vector<64x8xf32> to vector<32x8xf32>
    %17 = vector.extract_strided_slice %15 {offsets = [32, 0], sizes = [32, 8], strides = [1, 1]} : vector<64x8xf32> to vector<32x8xf32>
    %cst_17 = arith.constant dense<0.000000e+00> : vector<8x128xf32>
    %18 = tpu.matmul %16, %10, %cst_17 {dimension_numbers = #tpu.dot_dimension_numbers<[0], [0], [1], [1], [0, 1, 1, 1], [], []>} : vector<32x8xf32>, vector<32x128xf32>, vector<8x128xf32> -> vector<8x128xf32>
    %19 = tpu.concatenate %5, %5 in 1 : vector<8x64xf32>, vector<8x64xf32> -> vector<8x128xf32>
    %20 = arith.addf %18, %19 : vector<8x128xf32>
    %cst_18 = arith.constant dense<0xFF800000> : vector<128xf32>
    %21 = vector.multi_reduction <maximumf>, %20, %cst_18 [0] : vector<8x128xf32> to vector<128xf32>
    %22 = vector.shape_cast %21 : vector<128xf32> to vector<1x128xf32>
    %23 = vector.broadcast %22 : vector<1x128xf32> to vector<8x128xf32>
    %24 = arith.subf %20, %23 : vector<8x128xf32>
    %25 = math.exp %24 : vector<8x128xf32>
    %cst_19 = arith.constant dense<0.000000e+00> : vector<128xf32>
    %26 = vector.multi_reduction <add>, %25, %cst_19 [0] : vector<8x128xf32> to vector<128xf32>
    %27 = vector.shape_cast %26 : vector<128xf32> to vector<1x128xf32>
    %28 = tpu.reciprocal %27 {approx = true} : vector<1x128xf32> -> vector<1x128xf32>
    %29 = vector.broadcast %28 : vector<1x128xf32> to vector<8x128xf32>
    %30 = arith.mulf %25, %29 : vector<8x128xf32>
    %cst_20 = arith.constant dense<0.000000e+00> : vector<32x128xf32>
    %31 = tpu.matmul %17, %30, %cst_20 {dimension_numbers = #tpu.dot_dimension_numbers<[1], [0], [0], [1], [0, 0, 1, 1], [], []>} : vector<32x8xf32>, vector<8x128xf32>, vector<32x128xf32> -> vector<32x128xf32>
    %c0_21 = arith.constant 0 : index
    %c0_22 = arith.constant 0 : index
    %c0_23 = arith.constant 0 : index
    %32 = vector.load %arg9[%c0_21, %c0_22, %c0_23] : memref<1x32x128xf32, #tpu.memory_space<vmem>>, vector<1x32x128xf32>
    %33 = vector.shape_cast %32 : vector<1x32x128xf32> to vector<32x128xf32>
    %34 = vector.shape_cast %31 : vector<32x128xf32> to vector<1x32x128xf32>
    tpu.vector_store %arg9[%c0_21, %c0_22, %c0_23], %34 {strides = array<i32>} : memref<1x32x128xf32, #tpu.memory_space<vmem>>, vector<1x32x128xf32>,
    return
  }
  func.func @transform_0(%arg0: i32, %arg1: i32) -> (i32, i32, i32) {
    %c0_i32 = arith.constant 0 : i32
    %c0_i32_0 = arith.constant 0 : i32
    return %arg0, %c0_i32, %arg1 : i32, i32, i32
  }
  func.func @transform_1(%arg0: i32, %arg1: i32) -> (i32, i32, i32) {
    %c0_i32 = arith.constant 0 : i32
    %c0_i32_0 = arith.constant 0 : i32
    %c0_i32_1 = arith.constant 0 : i32
    return %arg0, %c0_i32, %c0_i32_0 : i32, i32, i32
  }
  func.func @transform_2(%arg0: i32, %arg1: i32) -> (i32, i32, i32) {
    %c0_i32 = arith.constant 0 : i32
    %c0_i32_0 = arith.constant 0 : i32
    %c0_i32_1 = arith.constant 0 : i32
    return %arg0, %c0_i32, %c0_i32_0 : i32, i32, i32
  }
  func.func @transform_3(%arg0: i32, %arg1: i32) -> (i32, i32) {
    %c0_i32 = arith.constant 0 : i32
    %c0_i32_0 = arith.constant 0 : i32
    %c0_i32_1 = arith.constant 0 : i32
    return %c0_i32, %c0_i32_0 : i32, i32
  }
  func.func @transform_4(%arg0: i32, %arg1: i32) -> (i32, i32) {
    %c0_i32 = arith.constant 0 : i32
    %c0_i32_0 = arith.constant 0 : i32
    %c0_i32_1 = arith.constant 0 : i32
    return %c0_i32, %c0_i32_0 : i32, i32
  }
  func.func @transform_5(%arg0: i32, %arg1: i32) -> (i32, i32) {
    %c0_i32 = arith.constant 0 : i32
    %c0_i32_0 = arith.constant 0 : i32
    %c0_i32_1 = arith.constant 0 : i32
    return %c0_i32, %c0_i32_0 : i32, i32
  }
  func.func @transform_6(%arg0: i32, %arg1: i32) -> (i32, i32) {
    %c0_i32 = arith.constant 0 : i32
    %c0_i32_0 = arith.constant 0 : i32
    %c0_i32_1 = arith.constant 0 : i32
    return %c0_i32, %c0_i32_0 : i32, i32
  }
  func.func @transform_7(%arg0: i32, %arg1: i32) -> (i32, i32, i32) {
    %c0_i32 = arith.constant 0 : i32
    %c0_i32_0 = arith.constant 0 : i32
    return %arg0, %c0_i32, %arg1 : i32, i32, i32
  }
}

</mosaic_0001>

<llo_original>
// kernel: tpu_custom_call.1
$region0: #{tpu_custom_call.1}
  #allocation0 [shape = 'u32[]', space=smem, size = 0x4, offset = 0x4, fixed_abs, tag = 'smem constant byte address 0x4 - core index']
  #allocation1 [shape = 'u32[144,128]{1,0:T(1,128)}', space=vmem, size = 0x12000, scoped, tag = 'internal scratch']
  %s0 = inlined_call_operand.vmem [shape: bf16[2,32,128], index: 0, kind: input, shape index: {}]
  %s1 = inlined_call_operand.vmem [shape: bf16[2,16,8], index: 1, kind: input, shape index: {}]
  %s2 = inlined_call_operand.vmem [shape: f32[2,8,64], index: 2, kind: input, shape index: {}]
  %s3 = inlined_call_operand.vmem [shape: bf16[32,32], index: 3, kind: input, shape index: {}]
  %s4 = inlined_call_operand.vmem [shape: f32[32,1], index: 4, kind: input, shape index: {}]
  %s5 = inlined_call_operand.vmem [shape: bf16[64,16], index: 5, kind: input, shape index: {}]
  %s6 = inlined_call_operand.vmem [shape: f32[64,1], index: 6, kind: input, shape index: {}]
  %s7 = inlined_call_operand.hbm [shape: f32[2,32,128], index: 7, kind: output, shape index: {}]
  %s8 = sld [smem:[#allocation0]]
  $region61: #{tpu_custom_call.1} parent=0
    _
  %s10 = ssub.s32 1, %s8
  %s11 = scalar_select 0, %s10, %s8
  $region1: #{tpu_custom_call.1} parent=0
    #allocation2 [shape = 'u8[32768]{0}', space=vmem, size = 0x8000, scoped, tag = 'output window, operand 0']
    #allocation3 [shape = 's32[2]{0}', space=sflag, size = 0x8, scoped, tag = 'scoped memory for tpu_custom_call.1']
    %12 = vsyncpa [#allocation3], 0
    %s13 = scalar_lea.sflag [#allocation3], 1
    %14 = vsyncpa %s13, 0
    loop: start=0, step=1, limit=4
    $region2: #{tpu_custom_call.1} parent=1 // loop_pre_header
      _
    $region3: #{tpu_custom_call.1} parent=1 // loop_header
      %s16 = sphi 0, %s20
      %p17 = scmp.ge.s32.totalorder %s16, 4
      %s23 = sphi 0, %s35
      %s24 = sphi 0, %s31
      %s25 = sphi 0, %s23
      %s26 = sphi 0, %s24
      %s27 = sphi 0, %s25
      %s28 = sphi 0, %s26
      %s40 = sphi 0, %s42
      %s43 = sphi 0, %s40
      %s44 = sphi 0, %s43
      %s60 = sphi 0, %s44
      %s66 = sphi 0, %s68
      %s69 = sphi 0, %s66
      %s70 = sphi 0, %s69
      %s86 = sphi 0, %s70
      %s92 = sphi 0, %s94
      %s95 = sphi 0, %s92
      %s96 = sphi 0, %s95
      %s112 = sphi 0, %s96
      %s116 = sphi 0, %s116
      %s118 = sphi 0, %s116
      %s119 = sphi 0, %s118
      %s133 = sphi 0, %s119
      %s137 = sphi 0, %s137
      %s139 = sphi 0, %s137
      %s140 = sphi 0, %s139
      %s154 = sphi 0, %s140
      %s158 = sphi 0, %s158
      %s160 = sphi 0, %s158
      %s161 = sphi 0, %s160
      %s175 = sphi 0, %s161
      %s179 = sphi 0, %s179
      %s181 = sphi 0, %s179
      %s182 = sphi 0, %s181
      %s196 = sphi 0, %s182
      %s204 = sphi 0, %s206
      %s207 = sphi 0, %s204
      %s208 = sphi 0, %s207
      %s224 = sphi 0, %s208
    $region4: #{tpu_custom_call.1} parent=1 // loop_header_branch
      %19 = sbr.rel (%p17) target = $region8
    $region5: #{tpu_custom_call.1} parent=1 // loop_body
      %s21 = ssub.s32 %s16, 1
      %s22 = ssub.s32 %s16, 2
      %s29 = sadd.s32 1, %s24
      %p30 = scmp.ge.s32.totalorder %s29, 1
      %s31 = scalar_select %p30, 0, %s29
      %s32 = sadd.s32 1, %s23
      %s33 = scalar_select %p30, %s32, %s23
      %p34 = scmp.ge.s32.totalorder %s33, 2
      %s35 = scalar_select %p34, 0, %s33
      %s36 = ssub.s32 %s23, %s35
      %s37 = ssub.s32 %s24, %s31
      %s38 = sor.u32 %s36, %s37
      %p39 = scmp.eq.s32.totalorder %s38, 0
      %s41 = sadd.s32 %s40, 1
      %s42 = scalar_select %p39, %s40, %s41
      %p45 = pneg %p39
      %p46 = scmp.eq.s32.totalorder %s16, 1
      %p47 = por %p45, %p46
      %p48 = scmp.ne.s32.totalorder %s40, %s43
      %p49 = scmp.eq.s32.totalorder %s16, 0
      %p50 = por %p48, %p49
      %p51 = scmp.ne.s32.totalorder %s40, %s43
      %p52 = scmp.eq.s32.totalorder %s21, 1
      %p53 = por %p51, %p52
      %p54 = scmp.ne.s32.totalorder %s43, %s44
      %p55 = scmp.eq.s32.totalorder %s21, 0
      %p56 = por %p54, %p55
      %p57 = scmp.ne.s32.totalorder %s43, %s44
      %p58 = scmp.eq.s32.totalorder %s22, 1
      %p59 = por %p57, %p58
      %p61 = scmp.ne.s32.totalorder %s44, %s60
      %p62 = scmp.eq.s32.totalorder %s22, 0
      %p63 = por %p61, %p62
      %s64 = ssub.s32 %s23, %s35
      %p65 = scmp.eq.s32.totalorder %s64, 0
      %s67 = sadd.s32 %s66, 1
      %s68 = scalar_select %p65, %s66, %s67
      %p71 = pneg %p65
      %p72 = scmp.eq.s32.totalorder %s16, 1
      %p73 = por %p71, %p72
      %p74 = scmp.ne.s32.totalorder %s66, %s69
      %p75 = scmp.eq.s32.totalorder %s16, 0
      %p76 = por %p74, %p75
      %p77 = scmp.ne.s32.totalorder %s66, %s69
      %p78 = scmp.eq.s32.totalorder %s21, 1
      %p79 = por %p77, %p78
      %p80 = scmp.ne.s32.totalorder %s69, %s70
      %p81 = scmp.eq.s32.totalorder %s21, 0
      %p82 = por %p80, %p81
      %p83 = scmp.ne.s32.totalorder %s69, %s70
      %p84 = scmp.eq.s32.totalorder %s22, 1
      %p85 = por %p83, %p84
      %p87 = scmp.ne.s32.totalorder %s70, %s86
      %p88 = scmp.eq.s32.totalorder %s22, 0
      %p89 = por %p87, %p88
      %s90 = ssub.s32 %s23, %s35
      %p91 = scmp.eq.s32.totalorder %s90, 0
      %s93 = sadd.s32 %s92, 1
      %s94 = scalar_select %p91, %s92, %s93
      %p97 = pneg %p91
      %p98 = scmp.eq.s32.totalorder %s16, 1
      %p99 = por %p97, %p98
      %p100 = scmp.ne.s32.totalorder %s92, %s95
      %p101 = scmp.eq.s32.totalorder %s16, 0
      %p102 = por %p100, %p101
      %p103 = scmp.ne.s32.totalorder %s92, %s95
      %p104 = scmp.eq.s32.totalorder %s21, 1
      %p105 = por %p103, %p104
      %p106 = scmp.ne.s32.totalorder %s95, %s96
      %p107 = scmp.eq.s32.totalorder %s21, 0
      %p108 = por %p106, %p107
      %p109 = scmp.ne.s32.totalorder %s95, %s96
      %p110 = scmp.eq.s32.totalorder %s22, 1
      %p111 = por %p109, %p110
      %p113 = scmp.ne.s32.totalorder %s96, %s112
      %p114 = scmp.eq.s32.totalorder %s22, 0
      %p115 = por %p113, %p114
      %s117 = sadd.s32 %s116, 1
      %p120 = scmp.eq.s32.totalorder %s16, 1
      %p121 = scmp.ne.s32.totalorder %s116, %s118
      %p122 = scmp.eq.s32.totalorder %s16, 0
      %p123 = por %p121, %p122
      %p124 = scmp.ne.s32.totalorder %s116, %s118
      %p125 = scmp.eq.s32.totalorder %s21, 1
      %p126 = por %p124, %p125
      %p127 = scmp.ne.s32.totalorder %s118, %s119
      %p128 = scmp.eq.s32.totalorder %s21, 0
      %p129 = por %p127, %p128
      %p130 = scmp.ne.s32.totalorder %s118, %s119
      %p131 = scmp.eq.s32.totalorder %s22, 1
      %p132 = por %p130, %p131
      %p134 = scmp.ne.s32.totalorder %s119, %s133
      %p135 = scmp.eq.s32.totalorder %s22, 0
      %p136 = por %p134, %p135
      %s138 = sadd.s32 %s137, 1
      %p141 = scmp.eq.s32.totalorder %s16, 1
      %p142 = scmp.ne.s32.totalorder %s137, %s139
      %p143 = scmp.eq.s32.totalorder %s16, 0
      %p144 = por %p142, %p143
      %p145 = scmp.ne.s32.totalorder %s137, %s139
      %p146 = scmp.eq.s32.totalorder %s21, 1
      %p147 = por %p145, %p146
      %p148 = scmp.ne.s32.totalorder %s139, %s140
      %p149 = scmp.eq.s32.totalorder %s21, 0
      %p150 = por %p148, %p149
      %p151 = scmp.ne.s32.totalorder %s139, %s140
      %p152 = scmp.eq.s32.totalorder %s22, 1
      %p153 = por %p151, %p152
      %p155 = scmp.ne.s32.totalorder %s140, %s154
      %p156 = scmp.eq.s32.totalorder %s22, 0
      %p157 = por %p155, %p156
      %s159 = sadd.s32 %s158, 1
      %p162 = scmp.eq.s32.totalorder %s16, 1
      %p163 = scmp.ne.s32.totalorder %s158, %s160
      %p164 = scmp.eq.s32.totalorder %s16, 0
      %p165 = por %p163, %p164
      %p166 = scmp.ne.s32.totalorder %s158, %s160
      %p167 = scmp.eq.s32.totalorder %s21, 1
      %p168 = por %p166, %p167
      %p169 = scmp.ne.s32.totalorder %s160, %s161
      %p170 = scmp.eq.s32.totalorder %s21, 0
      %p171 = por %p169, %p170
      %p172 = scmp.ne.s32.totalorder %s160, %s161
      %p173 = scmp.eq.s32.totalorder %s22, 1
      %p174 = por %p172, %p173
      %p176 = scmp.ne.s32.totalorder %s161, %s175
      %p177 = scmp.eq.s32.totalorder %s22, 0
      %p178 = por %p176, %p177
      %s180 = sadd.s32 %s179, 1
      %p183 = scmp.eq.s32.totalorder %s16, 1
      %p184 = scmp.ne.s32.totalorder %s179, %s181
      %p185 = scmp.eq.s32.totalorder %s16, 0
      %p186 = por %p184, %p185
      %p187 = scmp.ne.s32.totalorder %s179, %s181
      %p188 = scmp.eq.s32.totalorder %s21, 1
      %p189 = por %p187, %p188
      %p190 = scmp.ne.s32.totalorder %s181, %s182
      %p191 = scmp.eq.s32.totalorder %s21, 0
      %p192 = por %p190, %p191
      %p193 = scmp.ne.s32.totalorder %s181, %s182
      %p194 = scmp.eq.s32.totalorder %s22, 1
      %p195 = por %p193, %p194
      %p197 = scmp.ne.s32.totalorder %s182, %s196
      %p198 = scmp.eq.s32.totalorder %s22, 0
      %p199 = por %p197, %p198
      %s200 = ssub.s32 %s23, %s35
      %s201 = ssub.s32 %s24, %s31
      %s202 = sor.u32 %s200, %s201
      %p203 = scmp.eq.s32.totalorder %s202, 0
      %s205 = sadd.s32 %s204, 1
      %s206 = scalar_select %p203, %s204, %s205
      %p209 = pneg %p203
      %p210 = scmp.eq.s32.totalorder %s16, 1
      %p211 = por %p209, %p210
      %p212 = scmp.ne.s32.totalorder %s204, %s207
      %p213 = scmp.eq.s32.totalorder %s16, 0
      %p214 = por %p212, %p213
      %p215 = scmp.ne.s32.totalorder %s204, %s207
      %p216 = scmp.eq.s32.totalorder %s21, 1
      %p217 = por %p215, %p216
      %p218 = scmp.ne.s32.totalorder %s207, %s208
      %p219 = scmp.eq.s32.totalorder %s21, 0
      %p220 = por %p218, %p219
      %p221 = scmp.ne.s32.totalorder %s207, %s208
      %p222 = scmp.eq.s32.totalorder %s22, 1
      %p223 = por %p221, %p222
      %p225 = scmp.ne.s32.totalorder %s208, %s224
      %p226 = scmp.eq.s32.totalorder %s22, 0
      %p227 = por %p225, %p226
      %p228 = scmp.le.s32.totalorder 1, %s16
      %p229 = scmp.lt.s32.totalorder %s16, 3
      %p230 = pnand %p228, %p229
      %p231 = pneg %p230
      // Predicated region
      $region9: #{tpu_custom_call.1} parent=5 // pred_check
        _
      $region10: #{tpu_custom_call.1} parent=5 // pred_check_branch
        %233 = sbr.rel (%p230) target = $region12
      $region11: #{tpu_custom_call.1} parent=5 // pred_region
        %s234 = ssub.s32 %s16, 1
        // Predicated region
        $region13: #{tpu_custom_call.1} parent=11 // pred_check
          %p235 = pneg %p129
        $region14: #{tpu_custom_call.1} parent=11 // pred_check_branch
          %237 = sbr.rel (%p235) target = $region16
        $region15: #{tpu_custom_call.1} parent=11 // pred_region
          _
        $region16: #{tpu_custom_call.1} parent=11 // pred_fallthru
          _
        // Predicated region
        $region17: #{tpu_custom_call.1} parent=11 // pred_check
          %p238 = pneg %p150
        $region18: #{tpu_custom_call.1} parent=11 // pred_check_branch
          %240 = sbr.rel (%p238) target = $region20
        $region19: #{tpu_custom_call.1} parent=11 // pred_region
          _
        $region20: #{tpu_custom_call.1} parent=11 // pred_fallthru
          _
        // Predicated region
        $region21: #{tpu_custom_call.1} parent=11 // pred_check
          %p241 = pneg %p171
        $region22: #{tpu_custom_call.1} parent=11 // pred_check_branch
          %243 = sbr.rel (%p241) target = $region24
        $region23: #{tpu_custom_call.1} parent=11 // pred_region
          _
        $region24: #{tpu_custom_call.1} parent=11 // pred_fallthru
          _
        // Predicated region
        $region25: #{tpu_custom_call.1} parent=11 // pred_check
          %p244 = pneg %p192
        $region26: #{tpu_custom_call.1} parent=11 // pred_check_branch
          %246 = sbr.rel (%p244) target = $region28
        $region27: #{tpu_custom_call.1} parent=11 // pred_region
          _
        $region28: #{tpu_custom_call.1} parent=11 // pred_fallthru
          _
      $region12: #{tpu_custom_call.1} parent=5 // pred_fallthru
        _
      %p247 = scmp.lt.s32.totalorder %s16, 2
      // Predicated region
      $region29: #{tpu_custom_call.1} parent=5 // pred_check
        %p248 = pneg %p247
      $region30: #{tpu_custom_call.1} parent=5 // pred_check_branch
        %250 = sbr.rel (%p248) target = $region32
      $region31: #{tpu_custom_call.1} parent=5 // pred_region
        // Predicated region
        $region33: #{tpu_custom_call.1} parent=31 // pred_check
          %p251 = pneg %p50
        $region34: #{tpu_custom_call.1} parent=31 // pred_check_branch
          %253 = sbr.rel (%p251) target = $region36
        $region35: #{tpu_custom_call.1} parent=31 // pred_region
          %p254 = scmp.lt.s32.totalorder %s23, 1
          %s255 = scalar_select %p254, %s23, 1
          %p256 = scmp.lt.s32.totalorder %s24, 0
          %s257 = scalar_select %p256, %s24, 0
          %s258 = smul.addr %s255, 4
          %s259 = sadd.s32 %s257, %s258
          %s260 = smul.addr %s259, 4
          %s261 = scalar_lea.vmem %s0, %s260
        $region36: #{tpu_custom_call.1} parent=31 // pred_fallthru
          _
        // Predicated region
        $region37: #{tpu_custom_call.1} parent=31 // pred_check
          %p262 = pneg %p76
        $region38: #{tpu_custom_call.1} parent=31 // pred_check_branch
          %264 = sbr.rel (%p262) target = $region40
        $region39: #{tpu_custom_call.1} parent=31 // pred_region
          %p265 = scmp.lt.s32.totalorder %s23, 1
          %s266 = scalar_select %p265, %s23, 1
          %s267 = smul.addr %s266, 2
          %s268 = smul.addr %s267, 4
          %s269 = scalar_lea.vmem %s1, %s268
        $region40: #{tpu_custom_call.1} parent=31 // pred_fallthru
          _
        // Predicated region
        $region41: #{tpu_custom_call.1} parent=31 // pred_check
          %p270 = pneg %p102
        $region42: #{tpu_custom_call.1} parent=31 // pred_check_branch
          %272 = sbr.rel (%p270) target = $region44
        $region43: #{tpu_custom_call.1} parent=31 // pred_region
          %p273 = scmp.lt.s32.totalorder %s23, 1
          %s274 = scalar_select %p273, %s23, 1
          %s275 = smul.addr %s274, 8
          %s276 = scalar_lea.vmem %s2, %s275
        $region44: #{tpu_custom_call.1} parent=31 // pred_fallthru
          _
      $region32: #{tpu_custom_call.1} parent=5 // pred_fallthru
        _
      %p277 = scmp.le.s32.totalorder 1, %s16
      %p278 = scmp.lt.s32.totalorder %s16, 3
      %p279 = pnand %p277, %p278
      %p280 = pneg %p279
      // Predicated region
      $region45: #{tpu_custom_call.1} parent=5 // pred_check
        _
      $region46: #{tpu_custom_call.1} parent=5 // pred_check_branch
        %282 = sbr.rel (%p279) target = $region48
      $region47: #{tpu_custom_call.1} parent=5 // pred_region
        %s283 = ssub.s32 %s16, 1
        %p284 = scmp.lt.s32.totalorder %s25, 1
        %s285 = scalar_select %p284, %s25, 1
        %p286 = scmp.lt.s32.totalorder %s26, 0
        %s287 = scalar_select %p286, %s26, 0
        %s288 = smul.addr %s285, 4
        %s289 = sadd.s32 %s287, %s288
        %s290 = smul.addr %s289, 4
        %s291 = scalar_lea.vmem %s0, %s290
        %p292 = pneg %p56
        %p293 = pneg %p53
        %p294 = scmp.lt.s32.totalorder %s25, 1
        %s295 = scalar_select %p294, %s25, 1
        %s296 = smul.addr %s295, 2
        %s297 = smul.addr %s296, 4
        %s298 = scalar_lea.vmem %s1, %s297
        %p299 = pneg %p82
        %p300 = pneg %p79
        %p301 = scmp.lt.s32.totalorder %s25, 1
        %s302 = scalar_select %p301, %s25, 1
        %s303 = smul.addr %s302, 8
        %s304 = scalar_lea.vmem %s2, %s303
        %p305 = pneg %p108
        %p306 = pneg %p105
        %p307 = pneg %p129
        %p308 = pneg %p126
        %p309 = pneg %p150
        %p310 = pneg %p147
        %p311 = pneg %p171
        %p312 = pneg %p168
        %p313 = pneg %p192
        %p314 = pneg %p189
        %p315 = pneg %p220
        %p316 = pneg %p217
        %s317 = sand.u32 %s207, 1
        %s318 = scalar_lea.sflag [#allocation3], %s317
        %s319 = sand.u32 %s207, 1
        %s320 = smul.addr %s319, 32
        %s321 = scalar_lea.vmem [#allocation2], %s320
        %p322 = scmp.lt.s32.totalorder %s25, 1
        %s323 = scalar_select %p322, %s25, 1
        %p324 = scmp.lt.s32.totalorder %s26, 0
        %s325 = scalar_select %p324, %s26, 0
        %s326 = smul.addr %s323, 4
        %s327 = sadd.s32 %s325, %s326
        %s328 = smul.addr %s327, 4
        %s329 = scalar_lea.vmem %s0, %s328
        %p330 = scmp.lt.s32.totalorder %s25, 1
        %s331 = scalar_select %p330, %s25, 1
        %s332 = smul.addr %s331, 2
        %s333 = smul.addr %s332, 4
        %s334 = scalar_lea.vmem %s1, %s333
        %p335 = scmp.lt.s32.totalorder %s25, 1
        %s336 = scalar_select %p335, %s25, 1
        %s337 = smul.addr %s336, 8
        %s338 = scalar_lea.vmem %s2, %s337
        %v340 = vld [vmem:[%s329] sm:$0xf]
        %v341 = vld [vmem:[%s329 + $0x4] sm:$0xf]
        %v342 = vld [vmem:[%s329 + $0x8] sm:$0xf]
        %v343 = vld [vmem:[%s329 + $0xc] sm:$0xf]
        %v344 = vld [vmem:[%s334] sm:$0xf]
        %v345 = vld [vmem:[%s334 + $0x4] sm:$0xf]
        %v346 = vld [vmem:[%s338] sm:$0xff]
        %v347 = vld [vmem:[%s3] sm:$0xf]
        %v348 = vld [vmem:[%s3 + $0x4] sm:$0xf]
        %v349 = vld [vmem:[%s3 + $0x8] sm:$0xf]
        %v350 = vld [vmem:[%s3 + $0xc] sm:$0xf]
        %v351 = vld [vmem:[%s4] sm:$0xff]
        %v352 = vld [vmem:[%s4 + $0x8] sm:$0xff]
        %v353 = vld [vmem:[%s4 + $0x10] sm:$0xff]
        %v354 = vld [vmem:[%s4 + $0x18] sm:$0xff]
        %356 = vset.pattern.permute.xlu0 0
        %357 = vperm.xlu0 %356, %v351
        %v358 = vpop.permute.xlu0 %357
        %361 = vset.pattern.permute.xlu0 0
        %362 = vperm.xlu0 %361, %v352
        %v363 = vpop.permute.xlu0 %362
        %366 = vset.pattern.permute.xlu0 0
        %367 = vperm.xlu0 %366, %v353
        %v368 = vpop.permute.xlu0 %367
        %371 = vset.pattern.permute.xlu0 0
        %372 = vperm.xlu0 %371, %v354
        %v373 = vpop.permute.xlu0 %372
        %v379 = vunpack.c.l.b16 %v347
        %v380 = vunpack.c.l.b16 %v348
        %v381 = vunpack.c.l.b16 %v349
        %v382 = vunpack.c.l.b16 %v350
        %v383 = vpack.c.b16 %v380, %v379
        %v384 = vpack.c.b16 %v382, %v381
        %v389 = vunpack.c.l.b16 %v340
        %v390 = vunpack.c.l.b16 %v341
        %v391 = vunpack.c.l.b16 %v342
        %v392 = vunpack.c.l.b16 %v343
        %v393 = vpack.c.b16 %v390, %v389
        %v394 = vpack.c.b16 %v392, %v391
        %vm397 = vcmask 261120
        %v399 = vsel %vm397, %v383, 0
        %v402 = vsel %vm397, %v384, 0
        %404 = vmatprep.subr.bf16.mxu0 0
        %405 = vmatpush1.bf16.msra.mxu0 %v393
        %406 = vmatprep.subr.bf16.mxu0 0
        %407 = vmatpush1.bf16.msra.mxu0 %v394
        %408 = vmatprep.subr.bf16.mxu0 0
        %409 = vmatpush1.bf16.msra.mxu0 0
        %410 = vmatprep.subr.bf16.mxu0 0
        %411 = vmatpush1.bf16.msra.mxu0 0
        %412 = vmatprep.subr.bf16.mxu0 0
        %413 = vmatpush1.bf16.msra.mxu0 0
        %414 = vmatprep.subr.bf16.mxu0 0
        %415 = vmatpush1.bf16.msra.mxu0 0
        %416 = vmatprep.subr.bf16.mxu0 0
        %417 = vmatpush1.bf16.msra.mxu0 0
        %418 = vmatprep.subr.bf16.mxu0 0
        %419 = vmatpush1.bf16.msra.mxu0 0
        %420 = vmatprep.subr.bf16.mxu0 0
        %421 = vmatpush1.bf16.msra.mxu0 0
        %422 = vmatprep.subr.bf16.mxu0 0
        %423 = vmatpush1.bf16.msra.mxu0 0
        %424 = vmatprep.subr.bf16.mxu0 0
        %425 = vmatpush1.bf16.msra.mxu0 0
        %426 = vmatprep.subr.bf16.mxu0 0
        %427 = vmatpush1.bf16.msra.mxu0 0
        %428 = vmatprep.subr.bf16.mxu0 0
        %429 = vmatpush1.bf16.msra.mxu0 0
        %430 = vmatprep.subr.bf16.mxu0 0
        %431 = vmatpush1.bf16.msra.mxu0 0
        %432 = vmatprep.subr.bf16.mxu0 0
        %433 = vmatpush1.bf16.msra.mxu0 0
        %434 = vmatprep.subr.bf16.mxu0 0
        %435 = vmatpush1.bf16.msra.mxu0 0
        %436 = vmatprep.mubr.bf16.mxu0 0
        %437 = vmatmul.mubr.bf16.gmra.mrb[0].mxu0 %v399
        %v438 = vpop.f32.mrb[0].mxu0
        %v439 = vadd.f32 %v358, %v438
        %v440 = vpop.f32.mrb[0].mxu0
        %v441 = vpop.f32.mrb[0].mxu0
        %v442 = vadd.f32 %v363, %v441
        %v443 = vpop.f32.mrb[0].mxu0
        %444 = vmatprep.mubr.bf16.mxu0 0
        %445 = vmatmul.mubr.bf16.gmra.mrb[0].mxu0 %v402
        %v446 = vpop.f32.mrb[0].mxu0
        %v447 = vadd.f32 %v368, %v446
        %v448 = vpop.f32.mrb[0].mxu0
        %v449 = vpop.f32.mrb[0].mxu0
        %v450 = vadd.f32 %v373, %v449
        %v451 = vpop.f32.mrb[0].mxu0
        %452 = vdwg.mxu0
        %v453 = vld [vmem:[%s5] sm:$0xf]
        %v454 = vld [vmem:[%s5 + $0x4] sm:$0xf]
        %v455 = vld [vmem:[%s5 + $0x8] sm:$0xf]
        %v456 = vld [vmem:[%s5 + $0xc] sm:$0xf]
        %v457 = vld [vmem:[%s5 + $0x10] sm:$0xf]
        %v458 = vld [vmem:[%s5 + $0x14] sm:$0xf]
        %v459 = vld [vmem:[%s5 + $0x18] sm:$0xf]
        %v460 = vld [vmem:[%s5 + $0x1c] sm:$0xf]
        %v461 = vld [vmem:[%s6] sm:$0xff]
        %v462 = vld [vmem:[%s6 + $0x8] sm:$0xff]
        %v463 = vld [vmem:[%s6 + $0x10] sm:$0xff]
        %v464 = vld [vmem:[%s6 + $0x18] sm:$0xff]
        %v465 = vld [vmem:[%s6 + $0x20] sm:$0xff]
        %v466 = vld [vmem:[%s6 + $0x28] sm:$0xff]
        %v467 = vld [vmem:[%s6 + $0x30] sm:$0xff]
        %v468 = vld [vmem:[%s6 + $0x38] sm:$0xff]
        %470 = vset.pattern.permute.xlu0 0
        %471 = vperm.xlu0 %470, %v461
        %v472 = vpop.permute.xlu0 %471
        %475 = vset.pattern.permute.xlu0 0
        %476 = vperm.xlu0 %475, %v462
        %v477 = vpop.permute.xlu0 %476
        %480 = vset.pattern.permute.xlu0 0
        %481 = vperm.xlu0 %480, %v463
        %v482 = vpop.permute.xlu0 %481
        %485 = vset.pattern.permute.xlu0 0
        %486 = vperm.xlu0 %485, %v464
        %v487 = vpop.permute.xlu0 %486
        %490 = vset.pattern.permute.xlu0 0
        %491 = vperm.xlu0 %490, %v465
        %v492 = vpop.permute.xlu0 %491
        %495 = vset.pattern.permute.xlu0 0
        %496 = vperm.xlu0 %495, %v466
        %v497 = vpop.permute.xlu0 %496
        %500 = vset.pattern.permute.xlu0 0
        %501 = vperm.xlu0 %500, %v467
        %v502 = vpop.permute.xlu0 %501
        %505 = vset.pattern.permute.xlu0 0
        %506 = vperm.xlu0 %505, %v468
        %v507 = vpop.permute.xlu0 %506
        %v517 = vunpack.c.l.b16 %v453
        %v518 = vunpack.c.l.b16 %v454
        %v519 = vunpack.c.l.b16 %v455
        %v520 = vunpack.c.l.b16 %v456
        %v521 = vunpack.c.l.b16 %v457
        %v522 = vunpack.c.l.b16 %v458
        %v523 = vunpack.c.l.b16 %v459
        %v524 = vunpack.c.l.b16 %v460
        %v525 = vpack.c.b16 %v518, %v517
        %v526 = vpack.c.b16 %v520, %v519
        %v527 = vpack.c.b16 %v522, %v521
        %v528 = vpack.c.b16 %v524, %v523
        %v531 = vunpack.c.l.b16 %v344
        %v532 = vunpack.c.l.b16 %v345
        %v533 = vpack.c.b16 %v532, %v531
        %vm535 = vcmask 130048
        %v537 = vsel %vm535, %v525, 0
        %v540 = vsel %vm535, %v526, 0
        %v543 = vsel %vm535, %v527, 0
        %v546 = vsel %vm535, %v528, 0
        %548 = vmatprep.subr.bf16.mxu0 0
        %549 = vmatpush1.bf16.msra.mxu0 %v533
        %550 = vmatprep.subr.bf16.mxu0 0
        %551 = vmatpush1.bf16.msra.mxu0 0
        %552 = vmatprep.subr.bf16.mxu0 0
        %553 = vmatpush1.bf16.msra.mxu0 0
        %554 = vmatprep.subr.bf16.mxu0 0
        %555 = vmatpush1.bf16.msra.mxu0 0
        %556 = vmatprep.subr.bf16.mxu0 0
        %557 = vmatpush1.bf16.msra.mxu0 0
        %558 = vmatprep.subr.bf16.mxu0 0
        %559 = vmatpush1.bf16.msra.mxu0 0
        %560 = vmatprep.subr.bf16.mxu0 0
        %561 = vmatpush1.bf16.msra.mxu0 0
        %562 = vmatprep.subr.bf16.mxu0 0
        %563 = vmatpush1.bf16.msra.mxu0 0
        %564 = vmatprep.subr.bf16.mxu0 0
        %565 = vmatpush1.bf16.msra.mxu0 0
        %566 = vmatprep.subr.bf16.mxu0 0
        %567 = vmatpush1.bf16.msra.mxu0 0
        %568 = vmatprep.subr.bf16.mxu0 0
        %569 = vmatpush1.bf16.msra.mxu0 0
        %570 = vmatprep.subr.bf16.mxu0 0
        %571 = vmatpush1.bf16.msra.mxu0 0
        %572 = vmatprep.subr.bf16.mxu0 0
        %573 = vmatpush1.bf16.msra.mxu0 0
        %574 = vmatprep.subr.bf16.mxu0 0
        %575 = vmatpush1.bf16.msra.mxu0 0
        %576 = vmatprep.subr.bf16.mxu0 0
        %577 = vmatpush1.bf16.msra.mxu0 0
        %578 = vmatprep.subr.bf16.mxu0 0
        %579 = vmatpush1.bf16.msra.mxu0 0
        %580 = vmatprep.mubr.bf16.mxu0 0
        %581 = vmatmul.mubr.bf16.gmra.mrb[0].mxu0 %v537
        %v582 = vpop.f32.mrb[0].mxu0
        %v583 = vadd.f32 %v472, %v582
        %v584 = vpop.f32.mrb[0].mxu0
        %v585 = vpop.f32.mrb[0].mxu0
        %v586 = vadd.f32 %v477, %v585
        %v587 = vpop.f32.mrb[0].mxu0
        %588 = vmatprep.mubr.bf16.mxu0 0
        %589 = vmatmul.mubr.bf16.gmra.mrb[0].mxu0 %v540
        %v590 = vpop.f32.mrb[0].mxu0
        %v591 = vadd.f32 %v482, %v590
        %v592 = vpop.f32.mrb[0].mxu0
        %v593 = vpop.f32.mrb[0].mxu0
        %v594 = vadd.f32 %v487, %v593
        %v595 = vpop.f32.mrb[0].mxu0
        %596 = vmatprep.mubr.bf16.mxu0 0
        %597 = vmatmul.mubr.bf16.gmra.mrb[0].mxu0 %v543
        %v598 = vpop.f32.mrb[0].mxu0
        %v599 = vadd.f32 %v492, %v598
        %v600 = vpop.f32.mrb[0].mxu0
        %v601 = vpop.f32.mrb[0].mxu0
        %v602 = vadd.f32 %v497, %v601
        %v603 = vpop.f32.mrb[0].mxu0
        %604 = vmatprep.mubr.bf16.mxu0 0
        %605 = vmatmul.mubr.bf16.gmra.mrb[0].mxu0 %v546
        %v606 = vpop.f32.mrb[0].mxu0
        %v607 = vadd.f32 %v502, %v606
        %v608 = vpop.f32.mrb[0].mxu0
        %v609 = vpop.f32.mrb[0].mxu0
        %v610 = vadd.f32 %v507, %v609
        %v611 = vpop.f32.mrb[0].mxu0
        %612 = vdwg.mxu0
        %614 = vrot.lane.b32.xlu0 %v346, 64
        %v615 = vpop.permute.xlu0 %614
        %vm617 = vcmask 523264
        %v618 = vsel %vm617, %v346, %v615
        %619 = vxpose.xlu0.b32.start [1/16] %v583, 128
        %620 = vxpose.xlu0.b32.cont [2/16] %v586, 128
        %621 = vxpose.xlu0.b32.cont [3/16] %v591, 128
        %622 = vxpose.xlu0.b32.cont [4/16] %v594, 128
        %623 = vxpose.xlu0.b32.cont [5/16] 0.0, 128
        %624 = vxpose.xlu0.b32.cont [6/16] 0.0, 128
        %625 = vxpose.xlu0.b32.cont [7/16] 0.0, 128
        %626 = vxpose.xlu0.b32.cont [8/16] 0.0, 128
        %627 = vxpose.xlu0.b32.cont [9/16] 0.0, 128
        %628 = vxpose.xlu0.b32.cont [10/16] 0.0, 128
        %629 = vxpose.xlu0.b32.cont [11/16] 0.0, 128
        %630 = vxpose.xlu0.b32.cont [12/16] 0.0, 128
        %631 = vxpose.xlu0.b32.cont [13/16] 0.0, 128
        %632 = vxpose.xlu0.b32.cont [14/16] 0.0, 128
        %633 = vxpose.xlu0.b32.cont [15/16] 0.0, 128
        %634 = vxpose.xlu0.b32.end [16/16] 0.0, 128
        %v635 = vpop.trf.xlu0
        %v636 = vpop.trf.xlu0
        %v637 = vpop.trf.xlu0
        %v638 = vpop.trf.xlu0
        %v639 = vpop.trf.xlu0
        %v640 = vpop.trf.xlu0
        %v641 = vpop.trf.xlu0
        %v642 = vpop.trf.xlu0
        %v643 = vpop.trf.xlu0
        %v644 = vpop.trf.xlu0
        %v645 = vpop.trf.xlu0
        %v646 = vpop.trf.xlu0
        %v647 = vpop.trf.xlu0
        %v648 = vpop.trf.xlu0
        %v649 = vpop.trf.xlu0
        %v650 = vpop.trf.xlu0
        %v652 = vsel %vm397, %v635, 0
        %654 = vmatprep.subr.mxu0 0.0
        %655 = vmatpush1.msra.mxu0 %v439
        %656 = vmatprep.subr.mxu0 0.0
        %657 = vmatpush1.msra.mxu0 %v442
        %658 = vmatprep.subr.mxu0 0.0
        %659 = vmatpush1.msra.mxu0 %v447
        %660 = vmatprep.subr.mxu0 0.0
        %661 = vmatpush1.msra.mxu0 %v450
        %662 = vmatprep.subr.mxu0 0.0
        %663 = vmatpush1.msra.mxu0 0.0
        %664 = vmatprep.subr.mxu0 0.0
        %665 = vmatpush1.msra.mxu0 0.0
        %666 = vmatprep.subr.mxu0 0.0
        %667 = vmatpush1.msra.mxu0 0.0
        %668 = vmatprep.subr.mxu0 0.0
        %669 = vmatpush1.msra.mxu0 0.0
        %670 = vmatprep.subr.mxu0 0.0
        %671 = vmatpush1.msra.mxu0 0.0
        %672 = vmatprep.subr.mxu0 0.0
        %673 = vmatpush1.msra.mxu0 0.0
        %674 = vmatprep.subr.mxu0 0.0
        %675 = vmatpush1.msra.mxu0 0.0
        %676 = vmatprep.subr.mxu0 0.0
        %677 = vmatpush1.msra.mxu0 0.0
        %678 = vmatprep.subr.mxu0 0.0
        %679 = vmatpush1.msra.mxu0 0.0
        %680 = vmatprep.subr.mxu0 0.0
        %681 = vmatpush1.msra.mxu0 0.0
        %682 = vmatprep.subr.mxu0 0.0
        %683 = vmatpush1.msra.mxu0 0.0
        %684 = vmatprep.subr.mxu0 0.0
        %685 = vmatpush1.msra.mxu0 0.0
        %686 = vmatprep.subr.mxu0 0.0
        %687 = vmatpush1.msra.mxu0 0.0
        %688 = vmatprep.subr.mxu0 0.0
        %689 = vmatpush1.msra.mxu0 0.0
        %690 = vmatprep.subr.mxu0 0.0
        %691 = vmatpush1.msra.mxu0 0.0
        %692 = vmatprep.subr.mxu0 0.0
        %693 = vmatpush1.msra.mxu0 0.0
        %694 = vmatprep.subr.mxu0 0.0
        %695 = vmatpush1.msra.mxu0 0.0
        %696 = vmatprep.subr.mxu0 0.0
        %697 = vmatpush1.msra.mxu0 0.0
        %698 = vmatprep.subr.mxu0 0.0
        %699 = vmatpush1.msra.mxu0 0.0
        %700 = vmatprep.subr.mxu0 0.0
        %701 = vmatpush1.msra.mxu0 0.0
        %702 = vmatprep.subr.mxu0 0.0
        %703 = vmatpush1.msra.mxu0 0.0
        %704 = vmatprep.subr.mxu0 0.0
        %705 = vmatpush1.msra.mxu0 0.0
        %706 = vmatprep.subr.mxu0 0.0
        %707 = vmatpush1.msra.mxu0 0.0
        %708 = vmatprep.subr.mxu0 0.0
        %709 = vmatpush1.msra.mxu0 0.0
        %710 = vmatprep.subr.mxu0 0.0
        %711 = vmatpush1.msra.mxu0 0.0
        %712 = vmatprep.subr.mxu0 0.0
        %713 = vmatpush1.msra.mxu0 0.0
        %714 = vmatprep.subr.mxu0 0.0
        %715 = vmatpush1.msra.mxu0 0.0
        %716 = vmatprep.subr.mxu0 0.0
        %717 = vmatpush1.msra.mxu0 0.0
        %718 = vmatprep.mubr.f32.mxu0 0.0
        %719 = vmatmul.mubr.f32.gmra.mrb[0].mxu0 %v652
        %v720 = vpop.f32.mrb[0].mxu0
        %v721 = vadd.f32 %v618, %v720
        %v722 = vpop.f32.mrb[0].mxu0
        %723 = vdwg.mxu0
        %v724 = vrot.slane %v721, 4
        %v725 = vmax.f32 %v721, %v724
        %v726 = vrot.slane %v725, 2
        %v727 = vmax.f32 %v725, %v726
        %v728 = vrot.slane %v727, 1
        %v729 = vmax.f32 %v727, %v728
        %v730 = vsub.f32 %v721, %v729
        %v731 = vmul.f32 %v730, 1.442695
        %v732 = vpow.pop %v731
        %v733 = vrot.slane %v732, 4
        %v734 = vadd.f32 %v732, %v733
        %v735 = vrot.slane %v734, 2
        %v736 = vadd.f32 %v734, %v735
        %v737 = vrot.slane %v736, 1
        %v738 = vadd.f32 %v736, %v737
        %v739 = vrcp.pop %v738
        %v740 = vmul.f32 %v732, %v739
        %vm741 = vcmask 64512
        %v743 = vsel %vm741, %v599, 0
        %v746 = vsel %vm741, %v602, 0
        %v749 = vsel %vm741, %v607, 0
        %v752 = vsel %vm741, %v610, 0
        %754 = vmatprep.subr.mxu0 0.0
        %755 = vmatpush1.msra.mxu0 %v740
        %756 = vmatprep.subr.mxu0 0.0
        %757 = vmatpush1.msra.mxu0 0.0
        %758 = vmatprep.subr.mxu0 0.0
        %759 = vmatpush1.msra.mxu0 0.0
        %760 = vmatprep.subr.mxu0 0.0
        %761 = vmatpush1.msra.mxu0 0.0
        %762 = vmatprep.subr.mxu0 0.0
        %763 = vmatpush1.msra.mxu0 0.0
        %764 = vmatprep.subr.mxu0 0.0
        %765 = vmatpush1.msra.mxu0 0.0
        %766 = vmatprep.subr.mxu0 0.0
        %767 = vmatpush1.msra.mxu0 0.0
        %768 = vmatprep.subr.mxu0 0.0
        %769 = vmatpush1.msra.mxu0 0.0
        %770 = vmatprep.subr.mxu0 0.0
        %771 = vmatpush1.msra.mxu0 0.0
        %772 = vmatprep.subr.mxu0 0.0
        %773 = vmatpush1.msra.mxu0 0.0
        %774 = vmatprep.subr.mxu0 0.0
        %775 = vmatpush1.msra.mxu0 0.0
        %776 = vmatprep.subr.mxu0 0.0
        %777 = vmatpush1.msra.mxu0 0.0
        %778 = vmatprep.subr.mxu0 0.0
        %779 = vmatpush1.msra.mxu0 0.0
        %780 = vmatprep.subr.mxu0 0.0
        %781 = vmatpush1.msra.mxu0 0.0
        %782 = vmatprep.subr.mxu0 0.0
        %783 = vmatpush1.msra.mxu0 0.0
        %784 = vmatprep.subr.mxu0 0.0
        %785 = vmatpush1.msra.mxu0 0.0
        %786 = vmatprep.subr.mxu0 0.0
        %787 = vmatpush1.msra.mxu0 0.0
        %788 = vmatprep.subr.mxu0 0.0
        %789 = vmatpush1.msra.mxu0 0.0
        %790 = vmatprep.subr.mxu0 0.0
        %791 = vmatpush1.msra.mxu0 0.0
        %792 = vmatprep.subr.mxu0 0.0
        %793 = vmatpush1.msra.mxu0 0.0
        %794 = vmatprep.subr.mxu0 0.0
        %795 = vmatpush1.msra.mxu0 0.0
        %796 = vmatprep.subr.mxu0 0.0
        %797 = vmatpush1.msra.mxu0 0.0
        %798 = vmatprep.subr.mxu0 0.0
        %799 = vmatpush1.msra.mxu0 0.0
        %800 = vmatprep.subr.mxu0 0.0
        %801 = vmatpush1.msra.mxu0 0.0
        %802 = vmatprep.subr.mxu0 0.0
        %803 = vmatpush1.msra.mxu0 0.0
        %804 = vmatprep.subr.mxu0 0.0
        %805 = vmatpush1.msra.mxu0 0.0
        %806 = vmatprep.subr.mxu0 0.0
        %807 = vmatpush1.msra.mxu0 0.0
        %808 = vmatprep.subr.mxu0 0.0
        %809 = vmatpush1.msra.mxu0 0.0
        %810 = vmatprep.subr.mxu0 0.0
        %811 = vmatpush1.msra.mxu0 0.0
        %812 = vmatprep.subr.mxu0 0.0
        %813 = vmatpush1.msra.mxu0 0.0
        %814 = vmatprep.subr.mxu0 0.0
        %815 = vmatpush1.msra.mxu0 0.0
        %816 = vmatprep.subr.mxu0 0.0
        %817 = vmatpush1.msra.mxu0 0.0
        %818 = vmatprep.mubr.f32.mxu0 0.0
        %819 = vmatmul.mubr.f32.gmra.mrb[0].mxu0 %v743
        %v820 = vpop.f32.mrb[0].mxu0
        %v821 = vadd.f32 0.0, %v820
        %v822 = vpop.f32.mrb[0].mxu0
        %823 = vmatprep.mubr.f32.mxu0 0.0
        %824 = vmatmul.mubr.f32.gmra.mrb[0].mxu0 %v746
        %v825 = vpop.f32.mrb[0].mxu0
        %v826 = vadd.f32 0.0, %v825
        %v827 = vpop.f32.mrb[0].mxu0
        %828 = vmatprep.mubr.f32.mxu0 0.0
        %829 = vmatmul.mubr.f32.gmra.mrb[0].mxu0 %v749
        %v830 = vpop.f32.mrb[0].mxu0
        %v831 = vadd.f32 0.0, %v830
        %v832 = vpop.f32.mrb[0].mxu0
        %833 = vmatprep.mubr.f32.mxu0 0.0
        %834 = vmatmul.mubr.f32.gmra.mrb[0].mxu0 %v752
        %v835 = vpop.f32.mrb[0].mxu0
        %v836 = vadd.f32 0.0, %v835
        %v837 = vpop.f32.mrb[0].mxu0
        %838 = vdwg.mxu0
        %839 = vst [vmem:[%s321] sm:$0xff] %v821
        %840 = vst [vmem:[%s321 + $0x8] sm:$0xff] %v826
        %841 = vst [vmem:[%s321 + $0x10] sm:$0xff] %v831
        %842 = vst [vmem:[%s321 + $0x18] sm:$0xff] %v836
        %s843 = sand.u32 %s207, 1
        %s844 = scalar_lea.sflag [#allocation3], %s843
        %s845 = sand.u32 %s207, 1
        %s846 = smul.addr %s845, 32
        %s847 = scalar_lea.vmem [#allocation2], %s846
        // Predicated region
        $region49: #{tpu_custom_call.1} parent=47 // pred_check
          %p848 = pneg %p217
        $region50: #{tpu_custom_call.1} parent=47 // pred_check_branch
          %850 = sbr.rel (%p848) target = $region52
        $region51: #{tpu_custom_call.1} parent=47 // pred_region
          %s852 = ssub.s32 512, 512
          %853 = vsyncadd %s844, %s852
          %s854 = smul.addr %s25, 4
          %s855 = sadd.s32 %s26, %s854
          %s856 = smul.addr %s855, 128
          %s857 = scalar_lea.hbm %s7, %s856
          %s858 = sshll.u32 %s847, 4
          %s859 = int_to_ptr.vmem [resolvable:$true] %s858
          %864 = dma.vmem_to_hbm [thread:$0]  %s859, 512, %s857, %s844, 128, 128, 8
        $region52: #{tpu_custom_call.1} parent=47 // pred_fallthru
          _
      $region48: #{tpu_custom_call.1} parent=5 // pred_fallthru
        _
      %p865 = scmp.le.s32.totalorder 2, %s16
      // Predicated region
      $region53: #{tpu_custom_call.1} parent=5 // pred_check
        %p866 = pneg %p865
      $region54: #{tpu_custom_call.1} parent=5 // pred_check_branch
        %868 = sbr.rel (%p866) target = $region56
      $region55: #{tpu_custom_call.1} parent=5 // pred_region
        %s869 = ssub.s32 %s16, 2
        // Predicated region
        $region57: #{tpu_custom_call.1} parent=55 // pred_check
          %p870 = pneg %p223
        $region58: #{tpu_custom_call.1} parent=55 // pred_check_branch
          %872 = sbr.rel (%p870) target = $region60
        $region59: #{tpu_custom_call.1} parent=55 // pred_region
          %s873 = sand.u32 %s208, 1
          %s874 = scalar_lea.sflag [#allocation3], %s873
          %s875 = sand.u32 %s208, 1
          %s876 = smul.addr %s875, 32
          %s877 = scalar_lea.vmem [#allocation2], %s876
          %878 = dma.done %s874, 512
        $region60: #{tpu_custom_call.1} parent=55 // pred_fallthru
          _
      $region56: #{tpu_custom_call.1} parent=5 // pred_fallthru
        _
    $region6: #{tpu_custom_call.1} parent=1 // loop_footer
      %s20 = sadd.s32 1, %s16
    $region7: #{tpu_custom_call.1} parent=1 // loop_footer_branch
      %15 = sbr.rel target = $region3
    $region8: #{tpu_custom_call.1} parent=1 // loop_exit
      _
    %879 = vsyncpa [#allocation3], 1
    %s880 = scalar_lea.sflag [#allocation3], 1
    %881 = vsyncpa %s880, 1

</llo_original>
